<compile_context>
chip_gen: v7x
topology: tpu7x:2x2x1
jax: 0.10.0
libtpu: 0.0.40
codegen_flags: <defaults>
</compile_context>

<pallas_src>
import functools

import jax
import jax.numpy as jnp
import numpy as np
from jax.experimental import pallas as pl
from jax.experimental.pallas import tpu as pltpu


def _dino_loss_kernel(
    s_ref,      # (1, B, TD)  student logits tile for crop si
    t_ref,      # (B, TD)     teacher targets pre-summed over the crop axis
    out_ref,    # (1, 8, 128) per-student-crop loss (scalar broadcast)
    m_ref,      # (B, 1) running max of scaled student logits
    l_ref,      # (B, 1) running sum of exp(scaled - m)
    dot_ref,    # (B, 1) running sum_d t_sum * (s / temp)
    w_ref,      # (B, 1) running sum_d t_sum  (teacher mass per sample)
    *,
    inv_student_temp,
    inv_batch_size,
):
    di = pl.program_id(1)

    @pl.when(di == 0)
    def _init():
        m_ref[...] = jnp.full_like(m_ref, -jnp.inf)
        l_ref[...] = jnp.zeros_like(l_ref)
        dot_ref[...] = jnp.zeros_like(dot_ref)
        w_ref[...] = jnp.zeros_like(w_ref)

    # (B, TD) tiles; all math in f32 (inputs may be bf16 upstream).
    s = s_ref[0].astype(jnp.float32) * inv_student_temp
    t = t_ref[...].astype(jnp.float32)

    # Pieces of the cross-entropy that do not depend on the softmax
    # normalizer: accumulate directly, no rescaling needed.
    dot_ref[...] += jnp.sum(t * s, axis=-1, keepdims=True)
    w_ref[...] += jnp.sum(t, axis=-1, keepdims=True)

    # Online logsumexp over the (tiled) D axis.
    m_old = m_ref[...]
    m_new = jnp.maximum(m_old, jnp.max(s, axis=-1, keepdims=True))
    l_ref[...] = l_ref[...] * jnp.exp(m_old - m_new) + jnp.sum(
        jnp.exp(s - m_new), axis=-1, keepdims=True
    )
    m_ref[...] = m_new

    @pl.when(di == pl.num_programs(1) - 1)
    def _finalize():
        lse = m_ref[...] + jnp.log(l_ref[...])          # (B, 1)
        # sum_d t*lsm = sum_d t*(s/temp) - lse * sum_d t
        per_sample = dot_ref[...] - lse * w_ref[...]    # (B, 1)
        loss = -jnp.sum(per_sample) * inv_batch_size    # scalar per crop
        out_ref[...] = jnp.full(out_ref.shape, loss, dtype=out_ref.dtype)


def _choose_d_tile(d, max_d_tile):
    """Largest multiple of 128 that divides d and is <= max_d_tile."""
    if d <= max_d_tile:
        return d
    if d % 128 != 0:
        # TODO(synk): pad-and-mask path for out_dim not a multiple of 128.
        return d
    td = (max_d_tile // 128) * 128
    while td >= 128:
        if d % td == 0:
            return td
        td -= 128
    return d


def dino_loss_forward(student_outputs, teacher_outputs, student_temp=0.1,
                      *, max_d_tile=4096):
    """student_outputs: [S, B, D], teacher_outputs: [T, B, D] -> scalar loss.

    Numerically matches DINOLoss.forward: sum over all (student, teacher)
    crop pairs of -mean_B(sum_D(t * log_softmax(s / student_temp))).
    """
    S, B, D = student_outputs.shape
    T, Bt, Dt = teacher_outputs.shape
    assert (Bt, Dt) == (B, D)

    # Hoist the teacher loop:  sum_ti <t_ti, lsm> == <sum_ti t_ti, lsm>.
    # Accumulate the sum in f32, then cast back so bf16 inputs keep their
    # halved DMA footprint into the kernel.
    t_sum = jnp.sum(teacher_outputs.astype(jnp.float32), axis=0)
    t_sum = t_sum.astype(teacher_outputs.dtype)

    td = _choose_d_tile(D, max_d_tile)
    n_d = D // td

    kernel = functools.partial(
        _dino_loss_kernel,
        inv_student_temp=float(1.0 / student_temp),
        inv_batch_size=float(1.0 / B),
    )

    per_crop = pl.pallas_call(
        kernel,
        out_shape=jax.ShapeDtypeStruct((S, 8, 128), jnp.float32),
        grid_spec=pltpu.PrefetchScalarGridSpec(
            num_scalar_prefetch=0,
            grid=(S, n_d),
            in_specs=[
                pl.BlockSpec((1, B, td), lambda si, di: (si, 0, di)),
                pl.BlockSpec((B, td), lambda si, di: (0, di)),
            ],
            # One lane-dense (8, 128) slab per student crop; block index is
            # constant along the D (reduction) axis so it stays resident.
            out_specs=pl.BlockSpec((1, 8, 128), lambda si, di: (si, 0, 0)),
            scratch_shapes=[pltpu.VMEM((B, 1), jnp.float32)] * 4,
        ),
        compiler_params=pltpu.CompilerParams(
            # si: independent crops (v7x megacore can shard them);
            # di: reduction into the resident accumulators.
            dimension_semantics=("parallel", "arbitrary"),
        ),
    )(student_outputs, t_sum)

    # Final tiny reduction over crops in plain JAX.
    return jnp.sum(per_crop[:, 0, 0])


def softmax_center_teacher(teacher_output, center, teacher_temp):
    # Plain-JAX glue mirroring DINOLoss.softmax_center_teacher (used only to
    # build realistic teacher targets for the example run).
    return jax.nn.softmax((teacher_output - center) / teacher_temp, axis=-1)


def _reference_loss(student_outputs, teacher_outputs, student_temp=0.1):
    # Direct port of the nested loops in DINOLoss.forward.
    total = jnp.float32(0.0)
    for s in student_outputs:
        lsm = jax.nn.log_softmax(s.astype(jnp.float32) / student_temp, axis=-1)
        for t in teacher_outputs:
            loss = jnp.sum(t.astype(jnp.float32) * lsm, axis=-1)
            total = total - jnp.mean(loss)
    return total


if __name__ == "__main__":
    # Small shapes consistent with DINO: num crops x batch x out_dim.
    S_CROPS = 2      # student crops
    T_CROPS = 2      # teacher (global) crops
    BATCH = 8
    OUT_DIM = 256
    STUDENT_TEMP = 0.1
    TEACHER_TEMP = 0.07

    key = jax.random.PRNGKey(0)
    ks, kt = jax.random.split(key)

    student_outputs = jax.random.normal(
        ks, (S_CROPS, BATCH, OUT_DIM), dtype=jnp.float32
    )
    teacher_raw = jax.random.normal(
        kt, (T_CROPS, BATCH, OUT_DIM), dtype=jnp.float32
    )

    # Deterministic "buffer" init: center = zeros(1, out_dim), as in __init__.
    center = jnp.zeros((1, OUT_DIM), dtype=jnp.float32)
    teacher_outputs = softmax_center_teacher(teacher_raw, center, TEACHER_TEMP)

    ref = _reference_loss(student_outputs, teacher_outputs, STUDENT_TEMP)

    # Single-D-tile path (td == D).
    loss_full = dino_loss_forward(student_outputs, teacher_outputs, STUDENT_TEMP)
    loss_full = jax.block_until_ready(loss_full)
    np.testing.assert_allclose(
        np.asarray(loss_full), np.asarray(ref), rtol=1e-4, atol=1e-4
    )

    # Tiled-D path (exercises the online logsumexp across two 128-wide tiles).
    loss_tiled = dino_loss_forward(
        student_outputs, teacher_outputs, STUDENT_TEMP, max_d_tile=128
    )
    loss_tiled = jax.block_until_ready(loss_tiled)
    np.testing.assert_allclose(
        np.asarray(loss_tiled), np.asarray(ref), rtol=1e-4, atol=1e-4
    )

    print("KERNEL_OK")
</pallas_src>

<mosaic_0001>
module attributes {stable_mosaic.version = 11 : i64} {
  func.func @_dino_loss_kernel(%arg0: i32, %arg1: i32, %arg2: memref<1x8x256xf32, #tpu.memory_space<vmem>>, %arg3: memref<8x256xf32, #tpu.memory_space<vmem>>, %arg4: memref<1x8x128xf32, #tpu.memory_space<vmem>>, %arg5: memref<8x1xf32, #tpu.memory_space<vmem>>, %arg6: memref<8x1xf32, #tpu.memory_space<vmem>>, %arg7: memref<8x1xf32, #tpu.memory_space<vmem>>, %arg8: memref<8x1xf32, #tpu.memory_space<vmem>>) attributes {dimension_semantics = [#tpu.dimension_semantics<parallel>, #tpu.dimension_semantics<arbitrary>], iteration_bounds = array<i64: 2, 1>, scalar_prefetch = 0 : i64, scratch_operands = 4 : i64, tpu.core_type = #tpu.core_type<tc>, window_params = [{transform_indices = @transform_0, window_bounds = array<i64: 1, 8, 256>}, {transform_indices = @transform_1, window_bounds = array<i64: 8, 256>}, {transform_indices = @transform_2, window_bounds = array<i64: 1, 8, 128>}]} {
    %c0_i32 = arith.constant 0 : i32
    %0 = arith.cmpi eq, %arg1, %c0_i32 : i32
    %1 = arith.extui %0 : i1 to i32
    %c0_i32_0 = arith.constant 0 : i32
    %2 = arith.cmpi ne, %1, %c0_i32_0 : i32
    scf.if %2 {
      %cst_27 = arith.constant 0xFF800000 : f32
      %38 = vector.broadcast %cst_27 : f32 to vector<8x1xf32>
      %c0_28 = arith.constant 0 : index
      %c0_29 = arith.constant 0 : index
      %39 = vector.load %arg5[%c0_28, %c0_29] : memref<8x1xf32, #tpu.memory_space<vmem>>, vector<8x1xf32>
      tpu.vector_store %arg5[%c0_28, %c0_29], %38 {strides = array<i32>} : memref<8x1xf32, #tpu.memory_space<vmem>>, vector<8x1xf32>,
      %cst_30 = arith.constant 0.000000e+00 : f32
      %40 = vector.broadcast %cst_30 : f32 to vector<8x1xf32>
      %c0_31 = arith.constant 0 : index
      %c0_32 = arith.constant 0 : index
      %41 = vector.load %arg6[%c0_31, %c0_32] : memref<8x1xf32, #tpu.memory_space<vmem>>, vector<8x1xf32>
      tpu.vector_store %arg6[%c0_31, %c0_32], %40 {strides = array<i32>} : memref<8x1xf32, #tpu.memory_space<vmem>>, vector<8x1xf32>,
      %cst_33 = arith.constant 0.000000e+00 : f32
      %42 = vector.broadcast %cst_33 : f32 to vector<8x1xf32>
      %c0_34 = arith.constant 0 : index
      %c0_35 = arith.constant 0 : index
      %43 = vector.load %arg7[%c0_34, %c0_35] : memref<8x1xf32, #tpu.memory_space<vmem>>, vector<8x1xf32>
      tpu.vector_store %arg7[%c0_34, %c0_35], %42 {strides = array<i32>} : memref<8x1xf32, #tpu.memory_space<vmem>>, vector<8x1xf32>,
      %cst_36 = arith.constant 0.000000e+00 : f32
      %44 = vector.broadcast %cst_36 : f32 to vector<8x1xf32>
      %c0_37 = arith.constant 0 : index
      %c0_38 = arith.constant 0 : index
      %45 = vector.load %arg8[%c0_37, %c0_38] : memref<8x1xf32, #tpu.memory_space<vmem>>, vector<8x1xf32>
      tpu.vector_store %arg8[%c0_37, %c0_38], %44 {strides = array<i32>} : memref<8x1xf32, #tpu.memory_space<vmem>>, vector<8x1xf32>,
    } else {
    }
    %c0 = arith.constant 0 : index
    %c0_1 = arith.constant 0 : index
    %c0_2 = arith.constant 0 : index
    %3 = vector.load %arg2[%c0, %c0_1, %c0_2] : memref<1x8x256xf32, #tpu.memory_space<vmem>>, vector<1x8x256xf32>
    %4 = vector.shape_cast %3 : vector<1x8x256xf32> to vector<8x256xf32>
    %cst = arith.constant 1.000000e+01 : f32
    %5 = vector.broadcast %cst : f32 to vector<8x256xf32>
    %6 = arith.mulf %4, %5 : vector<8x256xf32>
    %c0_3 = arith.constant 0 : index
    %c0_4 = arith.constant 0 : index
    %7 = vector.load %arg3[%c0_3, %c0_4] : memref<8x256xf32, #tpu.memory_space<vmem>>, vector<8x256xf32>
    %c0_5 = arith.constant 0 : index
    %c0_6 = arith.constant 0 : index
    %8 = vector.load %arg7[%c0_5, %c0_6] : memref<8x1xf32, #tpu.memory_space<vmem>>, vector<8x1xf32>
    %9 = arith.mulf %7, %6 : vector<8x256xf32>
    %cst_7 = arith.constant dense<0.000000e+00> : vector<8xf32>
    %10 = vector.multi_reduction <add>, %9, %cst_7 [1] : vector<8x256xf32> to vector<8xf32>
    %11 = vector.shape_cast %10 : vector<8xf32> to vector<8x1xf32>
    %12 = arith.addf %8, %11 : vector<8x1xf32>
    %c0_8 = arith.constant 0 : index
    %c0_9 = arith.constant 0 : index
    %13 = vector.load %arg7[%c0_8, %c0_9] : memref<8x1xf32, #tpu.memory_space<vmem>>, vector<8x1xf32>
    tpu.vector_store %arg7[%c0_8, %c0_9], %12 {strides = array<i32>} : memref<8x1xf32, #tpu.memory_space<vmem>>, vector<8x1xf32>,
    %c0_10 = arith.constant 0 : index
    %c0_11 = arith.constant 0 : index
    %14 = vector.load %arg8[%c0_10, %c0_11] : memref<8x1xf32, #tpu.memory_space<vmem>>, vector<8x1xf32>
    %cst_12 = arith.constant dense<0.000000e+00> : vector<8xf32>
    %15 = vector.multi_reduction <add>, %7, %cst_12 [1] : vector<8x256xf32> to vector<8xf32>
    %16 = vector.shape_cast %15 : vector<8xf32> to vector<8x1xf32>
    %17 = arith.addf %14, %16 : vector<8x1xf32>
    %c0_13 = arith.constant 0 : index
    %c0_14 = arith.constant 0 : index
    %18 = vector.load %arg8[%c0_13, %c0_14] : memref<8x1xf32, #tpu.memory_space<vmem>>, vector<8x1xf32>
    tpu.vector_store %arg8[%c0_13, %c0_14], %17 {strides = array<i32>} : memref<8x1xf32, #tpu.memory_space<vmem>>, vector<8x1xf32>,
    %c0_15 = arith.constant 0 : index
    %c0_16 = arith.constant 0 : index
    %19 = vector.load %arg5[%c0_15, %c0_16] : memref<8x1xf32, #tpu.memory_space<vmem>>, vector<8x1xf32>
    %cst_17 = arith.constant dense<0xFF800000> : vector<8xf32>
    %20 = vector.multi_reduction <maximumf>, %6, %cst_17 [1] : vector<8x256xf32> to vector<8xf32>
    %21 = vector.shape_cast %20 : vector<8xf32> to vector<8x1xf32>
    %22 = arith.maximumf %19, %21 : vector<8x1xf32>
    %c0_18 = arith.constant 0 : index
    %c0_19 = arith.constant 0 : index
    %23 = vector.load %arg6[%c0_18, %c0_19] : memref<8x1xf32, #tpu.memory_space<vmem>>, vector<8x1xf32>
    %24 = arith.subf %19, %22 : vector<8x1xf32>
    %25 = math.exp %24 : vector<8x1xf32>
    %26 = arith.mulf %23, %25 : vector<8x1xf32>
    %27 = vector.broadcast %22 : vector<8x1xf32> to vector<8x256xf32>
    %28 = arith.subf %6, %27 : vector<8x256xf32>
    %29 = math.exp %28 : vector<8x256xf32>
    %cst_20 = arith.constant dense<0.000000e+00> : vector<8xf32>
    %30 = vector.multi_reduction <add>, %29, %cst_20 [1] : vector<8x256xf32> to vector<8xf32>
    %31 = vector.shape_cast %30 : vector<8xf32> to vector<8x1xf32>
    %32 = arith.addf %26, %31 : vector<8x1xf32>
    %c0_21 = arith.constant 0 : index
    %c0_22 = arith.constant 0 : index
    %33 = vector.load %arg6[%c0_21, %c0_22] : memref<8x1xf32, #tpu.memory_space<vmem>>, vector<8x1xf32>
    tpu.vector_store %arg6[%c0_21, %c0_22], %32 {strides = array<i32>} : memref<8x1xf32, #tpu.memory_space<vmem>>, vector<8x1xf32>,
    %c0_23 = arith.constant 0 : index
    %c0_24 = arith.constant 0 : index
    %34 = vector.load %arg5[%c0_23, %c0_24] : memref<8x1xf32, #tpu.memory_space<vmem>>, vector<8x1xf32>
    tpu.vector_store %arg5[%c0_23, %c0_24], %22 {strides = array<i32>} : memref<8x1xf32, #tpu.memory_space<vmem>>, vector<8x1xf32>,
    %c0_i32_25 = arith.constant 0 : i32
    %35 = arith.cmpi eq, %arg1, %c0_i32_25 : i32
    %36 = arith.extui %35 : i1 to i32
    %c0_i32_26 = arith.constant 0 : i32
    %37 = arith.cmpi ne, %36, %c0_i32_26 : i32
    scf.if %37 {
      %c0_27 = arith.constant 0 : index
      %c0_28 = arith.constant 0 : index
      %38 = vector.load %arg5[%c0_27, %c0_28] : memref<8x1xf32, #tpu.memory_space<vmem>>, vector<8x1xf32>
      %c0_29 = arith.constant 0 : index
      %c0_30 = arith.constant 0 : index
      %39 = vector.load %arg6[%c0_29, %c0_30] : memref<8x1xf32, #tpu.memory_space<vmem>>, vector<8x1xf32>
      %40 = math.log %39 : vector<8x1xf32>
      %41 = arith.addf %38, %40 : vector<8x1xf32>
      %c0_31 = arith.constant 0 : index
      %c0_32 = arith.constant 0 : index
      %42 = vector.load %arg7[%c0_31, %c0_32] : memref<8x1xf32, #tpu.memory_space<vmem>>, vector<8x1xf32>
      %c0_33 = arith.constant 0 : index
      %c0_34 = arith.constant 0 : index
      %43 = vector.load %arg8[%c0_33, %c0_34] : memref<8x1xf32, #tpu.memory_space<vmem>>, vector<8x1xf32>
      %44 = arith.mulf %41, %43 : vector<8x1xf32>
      %45 = arith.subf %42, %44 : vector<8x1xf32>
      %46 = vector.shape_cast %45 : vector<8x1xf32> to vector<1x8x1xf32>
      %cst_35 = arith.constant dense<0.000000e+00> : vector<1xf32>
      %47 = vector.multi_reduction <add>, %46, %cst_35 [1, 2] : vector<1x8x1xf32> to vector<1xf32>
      %48 = vector.shape_cast %47 : vector<1xf32> to vector<1x1x1xf32>
      %49 = vector.extract %48[0, 0, 0] : f32 from vector<1x1x1xf32>
      %cst_36 = arith.constant 0.000000e+00 : f32
      %50 = arith.subf %cst_36, %49 : f32
      %cst_37 = arith.constant 1.250000e-01 : f32
      %51 = arith.mulf %50, %cst_37 : f32
      %52 = vector.broadcast %51 : f32 to vector<1x8x128xf32>
      %c0_38 = arith.constant 0 : index
      %c0_39 = arith.constant 0 : index
      %c0_40 = arith.constant 0 : index
      %53 = vector.load %arg4[%c0_38, %c0_39, %c0_40] : memref<1x8x128xf32, #tpu.memory_space<vmem>>, vector<1x8x128xf32>
      tpu.vector_store %arg4[%c0_38, %c0_39, %c0_40], %52 {strides = array<i32>} : memref<1x8x128xf32, #tpu.memory_space<vmem>>, vector<1x8x128xf32>,
    } else {
    }
    return
  }
  func.func @transform_0(%arg0: i32, %arg1: i32) -> (i32, i32, i32) {
    %c0_i32 = arith.constant 0 : i32
    %c0_i32_0 = arith.constant 0 : i32
    return %arg0, %c0_i32, %arg1 : i32, i32, i32
  }
  func.func @transform_1(%arg0: i32, %arg1: i32) -> (i32, i32) {
    %c0_i32 = arith.constant 0 : i32
    %c0_i32_0 = arith.constant 0 : i32
    return %c0_i32, %arg1 : i32, i32
  }
  func.func @transform_2(%arg0: i32, %arg1: i32) -> (i32, i32, i32) {
    %c0_i32 = arith.constant 0 : i32
    %c0_i32_0 = arith.constant 0 : i32
    %c0_i32_1 = arith.constant 0 : i32
    return %arg0, %c0_i32, %c0_i32_0 : i32, i32, i32
  }
}

</mosaic_0001>

<llo_original>
// kernel: tpu_custom_call.1
$region0: #{tpu_custom_call.1}
  #allocation0 [shape = 'u32[]', space=smem, size = 0x4, offset = 0x4, fixed_abs, tag = 'smem constant byte address 0x4 - core index']
  #allocation1 [shape = 'u32[144,128]{1,0:T(1,128)}', space=vmem, size = 0x12000, scoped, tag = 'internal scratch']
  #allocation2 [shape = 'f32[8,1]{1,0:T(8,128)}', space=vmem, size = 0x1000, scoped, tag = 'scratch operand']
  #allocation3 [shape = 'f32[8,1]{1,0:T(8,128)}', space=vmem, size = 0x1000, scoped, tag = 'scratch operand']
  #allocation4 [shape = 'f32[8,1]{1,0:T(8,128)}', space=vmem, size = 0x1000, scoped, tag = 'scratch operand']
  #allocation5 [shape = 'f32[8,1]{1,0:T(8,128)}', space=vmem, size = 0x1000, scoped, tag = 'scratch operand']
  %s0 = inlined_call_operand.hbm [shape: f32[2,8,256], index: 0, kind: input, shape index: {}]
  %s1 = inlined_call_operand.hbm [shape: f32[8,256], index: 1, kind: input, shape index: {}]
  %s2 = inlined_call_operand.hbm [shape: f32[2,8,128], index: 2, kind: output, shape index: {}]
  %s3 = sld [smem:[#allocation0]]
  $region57: #{tpu_custom_call.1} parent=0
    _
  %s5 = ssub.s32 1, %s3
  %s6 = scalar_select 0, %s5, %s3
  $region1: #{tpu_custom_call.1} parent=0
    #allocation6 [shape = 'u8[16384]{0}', space=vmem, size = 0x4000, scoped, tag = 'input window, operand 0']
    #allocation7 [shape = 's32[2]{0}', space=sflag, size = 0x8, scoped, tag = 'scoped memory for tpu_custom_call.1']
    #allocation8 [shape = 's32[2]{0}', space=sflag, size = 0x8, scoped, tag = 'scoped memory for tpu_custom_call.1']
    #allocation9 [shape = 'u8[8192]{0}', space=vmem, size = 0x2000, scoped, tag = 'input window, operand 1, single buffered']
    #allocation10 [shape = 's32[1]{0}', space=sflag, size = 0x4, scoped, tag = 'scoped memory for tpu_custom_call.1']
    #allocation11 [shape = 'u8[8192]{0}', space=vmem, size = 0x2000, scoped, tag = 'output window, operand 0']
    %7 = vsyncpa [#allocation7], 0
    %s8 = scalar_lea.sflag [#allocation7], 1
    %9 = vsyncpa %s8, 0
    %10 = vsyncpa [#allocation10], 0
    %11 = vsyncpa [#allocation8], 0
    %s12 = scalar_lea.sflag [#allocation8], 1
    %13 = vsyncpa %s12, 0
    loop: start=0, step=1, limit=4
    $region2: #{tpu_custom_call.1} parent=1 // loop_pre_header
      _
    $region3: #{tpu_custom_call.1} parent=1 // loop_header
      %s15 = sphi 0, %s19
      %p16 = scmp.ge.s32.totalorder %s15, 4
      %s22 = sphi 0, %s34
      %s23 = sphi 0, %s30
      %s24 = sphi 0, %s22
      %s25 = sphi 0, %s23
      %s26 = sphi 0, %s24
      %s27 = sphi 0, %s25
      %s39 = sphi 0, %s41
      %s42 = sphi 0, %s39
      %s43 = sphi 0, %s42
      %s59 = sphi 0, %s43
      %s65 = sphi 0, %s67
      %s68 = sphi 0, %s65
      %s69 = sphi 0, %s68
      %s85 = sphi 0, %s69
      %s91 = sphi 0, %s93
      %s94 = sphi 0, %s91
      %s95 = sphi 0, %s94
      %s111 = sphi 0, %s95
    $region4: #{tpu_custom_call.1} parent=1 // loop_header_branch
      %18 = sbr.rel (%p16) target = $region8
    $region5: #{tpu_custom_call.1} parent=1 // loop_body
      %s20 = ssub.s32 %s15, 1
      %s21 = ssub.s32 %s15, 2
      %s28 = sadd.s32 1, %s23
      %p29 = scmp.ge.s32.totalorder %s28, 1
      %s30 = scalar_select %p29, 0, %s28
      %s31 = sadd.s32 1, %s22
      %s32 = scalar_select %p29, %s31, %s22
      %p33 = scmp.ge.s32.totalorder %s32, 2
      %s34 = scalar_select %p33, 0, %s32
      %s35 = ssub.s32 %s22, %s34
      %s36 = ssub.s32 %s23, %s30
      %s37 = sor.u32 %s35, %s36
      %p38 = scmp.eq.s32.totalorder %s37, 0
      %s40 = sadd.s32 %s39, 1
      %s41 = scalar_select %p38, %s39, %s40
      %p44 = pneg %p38
      %p45 = scmp.eq.s32.totalorder %s15, 1
      %p46 = por %p44, %p45
      %p47 = scmp.ne.s32.totalorder %s39, %s42
      %p48 = scmp.eq.s32.totalorder %s15, 0
      %p49 = por %p47, %p48
      %p50 = scmp.ne.s32.totalorder %s39, %s42
      %p51 = scmp.eq.s32.totalorder %s20, 1
      %p52 = por %p50, %p51
      %p53 = scmp.ne.s32.totalorder %s42, %s43
      %p54 = scmp.eq.s32.totalorder %s20, 0
      %p55 = por %p53, %p54
      %p56 = scmp.ne.s32.totalorder %s42, %s43
      %p57 = scmp.eq.s32.totalorder %s21, 1
      %p58 = por %p56, %p57
      %p60 = scmp.ne.s32.totalorder %s43, %s59
      %p61 = scmp.eq.s32.totalorder %s21, 0
      %p62 = por %p60, %p61
      %s63 = ssub.s32 %s23, %s30
      %p64 = scmp.eq.s32.totalorder %s63, 0
      %s66 = sadd.s32 %s65, 1
      %s67 = scalar_select %p64, %s65, %s66
      %p70 = pneg %p64
      %p71 = scmp.eq.s32.totalorder %s15, 1
      %p72 = por %p70, %p71
      %p73 = scmp.ne.s32.totalorder %s65, %s68
      %p74 = scmp.eq.s32.totalorder %s15, 0
      %p75 = por %p73, %p74
      %p76 = scmp.ne.s32.totalorder %s65, %s68
      %p77 = scmp.eq.s32.totalorder %s20, 1
      %p78 = por %p76, %p77
      %p79 = scmp.ne.s32.totalorder %s68, %s69
      %p80 = scmp.eq.s32.totalorder %s20, 0
      %p81 = por %p79, %p80
      %p82 = scmp.ne.s32.totalorder %s68, %s69
      %p83 = scmp.eq.s32.totalorder %s21, 1
      %p84 = por %p82, %p83
      %p86 = scmp.ne.s32.totalorder %s69, %s85
      %p87 = scmp.eq.s32.totalorder %s21, 0
      %p88 = por %p86, %p87
      %s89 = ssub.s32 %s22, %s34
      %p90 = scmp.eq.s32.totalorder %s89, 0
      %s92 = sadd.s32 %s91, 1
      %s93 = scalar_select %p90, %s91, %s92
      %p96 = pneg %p90
      %p97 = scmp.eq.s32.totalorder %s15, 1
      %p98 = por %p96, %p97
      %p99 = scmp.ne.s32.totalorder %s91, %s94
      %p100 = scmp.eq.s32.totalorder %s15, 0
      %p101 = por %p99, %p100
      %p102 = scmp.ne.s32.totalorder %s91, %s94
      %p103 = scmp.eq.s32.totalorder %s20, 1
      %p104 = por %p102, %p103
      %p105 = scmp.ne.s32.totalorder %s94, %s95
      %p106 = scmp.eq.s32.totalorder %s20, 0
      %p107 = por %p105, %p106
      %p108 = scmp.ne.s32.totalorder %s94, %s95
      %p109 = scmp.eq.s32.totalorder %s21, 1
      %p110 = por %p108, %p109
      %p112 = scmp.ne.s32.totalorder %s95, %s111
      %p113 = scmp.eq.s32.totalorder %s21, 0
      %p114 = por %p112, %p113
      %p115 = scmp.le.s32.totalorder 1, %s15
      %p116 = scmp.lt.s32.totalorder %s15, 3
      %p117 = pnand %p115, %p116
      %p118 = pneg %p117
      // Predicated region
      $region9: #{tpu_custom_call.1} parent=5 // pred_check
        _
      $region10: #{tpu_custom_call.1} parent=5 // pred_check_branch
        %120 = sbr.rel (%p117) target = $region12
      $region11: #{tpu_custom_call.1} parent=5 // pred_region
        %s121 = ssub.s32 %s15, 1
        // Predicated region
        $region13: #{tpu_custom_call.1} parent=11 // pred_check
          %p122 = pneg %p81
        $region14: #{tpu_custom_call.1} parent=11 // pred_check_branch
          %124 = sbr.rel (%p122) target = $region16
        $region15: #{tpu_custom_call.1} parent=11 // pred_region
          %s125 = smul.u32 2, %s25
          %s127 = ssub.s32 256, 256
          %128 = vsyncadd [#allocation10], %s127
          %s129 = smul.addr %s125, 128
          %s130 = scalar_lea.hbm %s1, %s129
          %s132 = sshll.u32 [#allocation9], 4
          %s133 = int_to_ptr.vmem [resolvable:$true] %s132
          %135 = dma.hbm_to_vmem [thread:$0]  %s130, 256, %s133, [#allocation10]
        $region16: #{tpu_custom_call.1} parent=11 // pred_fallthru
          _
      $region12: #{tpu_custom_call.1} parent=5 // pred_fallthru
        _
      %p136 = scmp.lt.s32.totalorder %s15, 2
      // Predicated region
      $region17: #{tpu_custom_call.1} parent=5 // pred_check
        %p137 = pneg %p136
      $region18: #{tpu_custom_call.1} parent=5 // pred_check_branch
        %139 = sbr.rel (%p137) target = $region20
      $region19: #{tpu_custom_call.1} parent=5 // pred_region
        // Predicated region
        $region21: #{tpu_custom_call.1} parent=19 // pred_check
          %p140 = pneg %p49
        $region22: #{tpu_custom_call.1} parent=19 // pred_check_branch
          %142 = sbr.rel (%p140) target = $region24
        $region23: #{tpu_custom_call.1} parent=19 // pred_region
          %s143 = sand.u32 %s39, 1
          %s144 = scalar_lea.sflag [#allocation7], %s143
          %s145 = sand.u32 %s39, 1
          %s146 = smul.addr %s145, 16
          %s147 = scalar_lea.vmem [#allocation6], %s146
          %s148 = smul.u32 2, %s23
          %s150 = ssub.s32 256, 256
          %151 = vsyncadd %s144, %s150
          %s152 = smul.addr %s22, 2
          %s153 = sadd.s32 %s148, %s152
          %s154 = smul.addr %s153, 128
          %s155 = scalar_lea.hbm %s0, %s154
          %s157 = sshll.u32 %s147, 4
          %s158 = int_to_ptr.vmem [resolvable:$true] %s157
          %160 = dma.hbm_to_vmem [thread:$0]  %s155, 256, %s158, %s144
        $region24: #{tpu_custom_call.1} parent=19 // pred_fallthru
          _
      $region20: #{tpu_custom_call.1} parent=5 // pred_fallthru
        _
      %p161 = scmp.le.s32.totalorder 1, %s15
      %p162 = scmp.lt.s32.totalorder %s15, 3
      %p163 = pnand %p161, %p162
      %p164 = pneg %p163
      // Predicated region
      $region25: #{tpu_custom_call.1} parent=5 // pred_check
        _
      $region26: #{tpu_custom_call.1} parent=5 // pred_check_branch
        %166 = sbr.rel (%p163) target = $region28
      $region27: #{tpu_custom_call.1} parent=5 // pred_region
        %s167 = ssub.s32 %s15, 1
        %s168 = sand.u32 %s42, 1
        %s169 = scalar_lea.sflag [#allocation7], %s168
        %s170 = sand.u32 %s42, 1
        %s171 = smul.addr %s170, 16
        %s172 = scalar_lea.vmem [#allocation6], %s171
        // Predicated region
        $region29: #{tpu_custom_call.1} parent=27 // pred_check
          %p173 = pneg %p55
        $region30: #{tpu_custom_call.1} parent=27 // pred_check_branch
          %175 = sbr.rel (%p173) target = $region32
        $region31: #{tpu_custom_call.1} parent=27 // pred_region
          %176 = dma.done %s169, 256
        $region32: #{tpu_custom_call.1} parent=27 // pred_fallthru
          _
        // Predicated region
        $region33: #{tpu_custom_call.1} parent=27 // pred_check
          %p177 = pneg %p81
        $region34: #{tpu_custom_call.1} parent=27 // pred_check_branch
          %179 = sbr.rel (%p177) target = $region36
        $region35: #{tpu_custom_call.1} parent=27 // pred_region
          %180 = dma.done [#allocation10], 256
        $region36: #{tpu_custom_call.1} parent=27 // pred_fallthru
          _
        %s181 = sand.u32 %s42, 1
        %s182 = scalar_lea.sflag [#allocation7], %s181
        %s183 = sand.u32 %s42, 1
        %s184 = smul.addr %s183, 16
        %s185 = scalar_lea.vmem [#allocation6], %s184
        %p186 = pneg %p55
        %p187 = pneg %p52
        %p188 = pneg %p81
        %p189 = pneg %p78
        %p190 = pneg %p107
        %p191 = pneg %p104
        %s192 = sand.u32 %s94, 1
        %s193 = scalar_lea.sflag [#allocation8], %s192
        %s194 = sand.u32 %s94, 1
        %s195 = smul.addr %s194, 8
        %s196 = scalar_lea.vmem [#allocation11], %s195
        %s197 = smul.u32 2, %s25
        %s198 = smul.u32 2, %s25
        %p199 = scmp.eq.s32.totalorder %s25, 0
        // Predicated region
        $region37: #{tpu_custom_call.1} parent=27 // pred_check
          %p200 = pneg %p199
        $region38: #{tpu_custom_call.1} parent=27 // pred_check_branch
          %202 = sbr.rel (%p200) target = $region40
        $region39: #{tpu_custom_call.1} parent=27 // pred_region
          %vm203 = vcmask 7168
          %204 = vst.msk [vmem:[#allocation2] sm:$0xff] %vm203, -inf
          %205 = vst.msk [vmem:[#allocation3] sm:$0xff] %vm203, 0.0
          %206 = vst.msk [vmem:[#allocation4] sm:$0xff] %vm203, 0.0
          %207 = vst.msk [vmem:[#allocation5] sm:$0xff] %vm203, 0.0
        $region40: #{tpu_custom_call.1} parent=27 // pred_fallthru
          _
        %v208 = vld [vmem:[%s172] sm:$0xff]
        %v209 = vld [vmem:[%s172 + $0x8] sm:$0xff]
        %v210 = vmul.f32 %v208, 10.0
        %v211 = vmul.f32 %v209, 10.0
        %v212 = vld [vmem:[#allocation9] sm:$0xff]
        %v213 = vld [vmem:[#allocation9 + $0x8] sm:$0xff]
        %v214 = vld [vmem:[#allocation4] sm:$0xff]
        %v215 = vmul.f32 %v212, %v210
        %v216 = vmul.f32 %v213, %v211
        %v217 = vadd.f32 %v215, %v216
        %218 = vadd.xlane.f32.xlu0 %v217
        %v219 = vpop.xlane.xlu0 %218
        %v220 = vadd.f32 %v214, %v219
        %vm221 = vcmask 7168
        %222 = vst.msk [vmem:[#allocation4] sm:$0xff] %vm221, %v220
        %v223 = vld [vmem:[#allocation5] sm:$0xff]
        %v224 = vadd.f32 %v212, %v213
        %225 = vadd.xlane.f32.xlu0 %v224
        %v226 = vpop.xlane.xlu0 %225
        %v227 = vadd.f32 %v223, %v226
        %228 = vst.msk [vmem:[#allocation5] sm:$0xff] %vm221, %v227
        %v229 = vld [vmem:[#allocation2] sm:$0xff]
        %v230 = vmax.f32 %v210, %v211
        %231 = vmax.xlane.f32.xlu0 %v230
        %v232 = vpop.xlane.xlu0 %231
        %v233 = vmax.f32 %v229, %v232
        %v234 = vld [vmem:[#allocation3] sm:$0xff]
        %v235 = vsub.f32 %v229, %v233
        %v236 = vmul.f32 %v235, 1.442695
        %v237 = vpow.pop %v236
        %v238 = vmul.f32 %v234, %v237
        %240 = vset.pattern.permute.xlu0 0
        %241 = vperm.xlu0 %240, %v233
        %v242 = vpop.permute.xlu0 %241
        %v244 = vsub.f32 %v210, %v242
        %v245 = vsub.f32 %v211, %v242
        %v246 = vmul.f32 %v244, 1.442695
        %v247 = vpow.pop %v246
        %v248 = vmul.f32 %v245, 1.442695
        %v249 = vpow.pop %v248
        %v250 = vadd.f32 %v247, %v249
        %251 = vadd.xlane.f32.xlu0 %v250
        %v252 = vpop.xlane.xlu0 %251
        %v253 = vadd.f32 %v238, %v252
        %254 = vst.msk [vmem:[#allocation3] sm:$0xff] %vm221, %v253
        %255 = vst.msk [vmem:[#allocation2] sm:$0xff] %vm221, %v233
        // Predicated region
        $region41: #{tpu_custom_call.1} parent=27 // pred_check
          %p256 = pneg %p199
        $region42: #{tpu_custom_call.1} parent=27 // pred_check_branch
          %258 = sbr.rel (%p256) target = $region44
        $region43: #{tpu_custom_call.1} parent=27 // pred_region
          %v259 = vld [vmem:[#allocation2] sm:$0xff]
          %v260 = vld [vmem:[#allocation3] sm:$0xff]
          %v261 = vlog2.pop %v260
          %v262 = vmul.f32 %v261, 0.6931472
          %v263 = vadd.f32 %v259, %v262
          %v264 = vld [vmem:[#allocation4] sm:$0xff]
          %v265 = vld [vmem:[#allocation5] sm:$0xff]
          %v266 = vmul.f32 %v263, %v265
          %v267 = vsub.f32 %v264, %v266
          %v268 = vsel %vm221, %v267, 0.0
          %269 = vadd.xlane.f32.xlu0 %v268
          %v270 = vpop.xlane.xlu0 %269
          %v271 = vrot.slane %v270, 4
          %v272 = vadd.f32 %v270, %v271
          %v273 = vrot.slane %v272, 2
          %v274 = vadd.f32 %v272, %v273
          %v275 = vrot.slane %v274, 1
          %v276 = vadd.f32 %v274, %v275
          %s277 = vtos %v276
          %s278 = ssub.f32 0.0, %s277
          %s279 = smul.f32 %s278, 0.125
          %v280 = vstv %s279
          %281 = vst [vmem:[%s196] sm:$0xff] %v280
        $region44: #{tpu_custom_call.1} parent=27 // pred_fallthru
          _
        %s282 = sand.u32 %s94, 1
        %s283 = scalar_lea.sflag [#allocation8], %s282
        %s284 = sand.u32 %s94, 1
        %s285 = smul.addr %s284, 8
        %s286 = scalar_lea.vmem [#allocation11], %s285
        // Predicated region
        $region45: #{tpu_custom_call.1} parent=27 // pred_check
          %p287 = pneg %p104
        $region46: #{tpu_custom_call.1} parent=27 // pred_check_branch
          %289 = sbr.rel (%p287) target = $region48
        $region47: #{tpu_custom_call.1} parent=27 // pred_region
          %s291 = ssub.s32 128, 128
          %292 = vsyncadd %s283, %s291
          %s293 = smul.addr %s24, 128
          %s294 = scalar_lea.hbm %s2, %s293
          %s296 = sshll.u32 %s286, 4
          %s297 = int_to_ptr.vmem [resolvable:$true] %s296
          %299 = dma.vmem_to_hbm [thread:$0]  %s297, 128, %s294, %s283
        $region48: #{tpu_custom_call.1} parent=27 // pred_fallthru
          _
      $region28: #{tpu_custom_call.1} parent=5 // pred_fallthru
        _
      %p300 = scmp.le.s32.totalorder 2, %s15
      // Predicated region
      $region49: #{tpu_custom_call.1} parent=5 // pred_check
        %p301 = pneg %p300
      $region50: #{tpu_custom_call.1} parent=5 // pred_check_branch
        %303 = sbr.rel (%p301) target = $region52
      $region51: #{tpu_custom_call.1} parent=5 // pred_region
        %s304 = ssub.s32 %s15, 2
        // Predicated region
        $region53: #{tpu_custom_call.1} parent=51 // pred_check
          %p305 = pneg %p110
        $region54: #{tpu_custom_call.1} parent=51 // pred_check_branch
          %307 = sbr.rel (%p305) target = $region56
        $region55: #{tpu_custom_call.1} parent=51 // pred_region
          %s308 = sand.u32 %s95, 1
          %s309 = scalar_lea.sflag [#allocation8], %s308
          %s310 = sand.u32 %s95, 1
          %s311 = smul.addr %s310, 8
          %s312 = scalar_lea.vmem [#allocation11], %s311
          %313 = dma.done %s309, 128
        $region56: #{tpu_custom_call.1} parent=51 // pred_fallthru
          _
      $region52: #{tpu_custom_call.1} parent=5 // pred_fallthru
        _
    $region6: #{tpu_custom_call.1} parent=1 // loop_footer
      %s19 = sadd.s32 1, %s15
    $region7: #{tpu_custom_call.1} parent=1 // loop_footer_branch
      %14 = sbr.rel target = $region3
    $region8: #{tpu_custom_call.1} parent=1 // loop_exit
      _
    %314 = vsyncpa [#allocation7], 1
    %s315 = scalar_lea.sflag [#allocation7], 1
    %316 = vsyncpa %s315, 1
    %317 = vsyncpa [#allocation10], 1
    %318 = vsyncpa [#allocation8], 1
    %s319 = scalar_lea.sflag [#allocation8], 1
    %320 = vsyncpa %s319, 1

</llo_original>
